<compile_context>
chip_gen: v5e
topology: v5e:2x2
jax: 0.10.0
libtpu: 0.0.40
codegen_flags: <defaults>
</compile_context>

<pallas_src>
import math

import jax
import jax.numpy as jnp
from jax.experimental import pallas as pl
from jax.experimental.pallas import tpu as pltpu


def _round_up(x, m):
    return ((x + m - 1) // m) * m


def _gelu_tanh(x):
    # GELU(approximate='tanh') exactly as PyTorch defines it.
    c = math.sqrt(2.0 / math.pi)
    return 0.5 * x * (1.0 + jnp.tanh(c * (x + 0.044715 * x * x * x)))


# ---------------------------------------------------------------------------
# Kernels
# ---------------------------------------------------------------------------
def _ffn_single_kernel(x_ref, w1_ref, b1_ref, w2_ref, b2_ref, o_ref):
    # Whole (padded) d_hidden in one shot: no accumulator, weights resident.
    h = jnp.dot(x_ref[...], w1_ref[...], preferred_element_type=jnp.float32)
    h = _gelu_tanh(h + b1_ref[...].astype(jnp.float32))
    out = jnp.dot(h.astype(w2_ref.dtype), w2_ref[...],
                  preferred_element_type=jnp.float32)
    o_ref[...] = (out + b2_ref[...].astype(jnp.float32)).astype(o_ref.dtype)


def _ffn_reduce_kernel(x_ref, w1_ref, b1_ref, w2_ref, b2_ref, o_ref, acc_ref):
    # x_ref : (TM, d_model)       current token tile
    # w1_ref: (d_model, TH)       current d_hidden slice of W1
    # b1_ref: (1, TH)
    # w2_ref: (TH, d_model)       current d_hidden slice of W2
    # b2_ref: (1, d_model)
    # o_ref : (TM, d_model)       output tile (resident across the k axis)
    # acc_ref: (TM, d_model) f32  VMEM scratch accumulator
    k = pl.program_id(1)

    @pl.when(k == 0)
    def _init():
        acc_ref[...] = jnp.zeros_like(acc_ref)

    h = jnp.dot(x_ref[...], w1_ref[...], preferred_element_type=jnp.float32)
    h = _gelu_tanh(h + b1_ref[...].astype(jnp.float32))
    acc_ref[...] += jnp.dot(h.astype(w2_ref.dtype), w2_ref[...],
                            preferred_element_type=jnp.float32)

    @pl.when(k == pl.num_programs(1) - 1)
    def _finalize():
        out = acc_ref[...] + b2_ref[...].astype(jnp.float32)
        o_ref[...] = out.astype(o_ref.dtype)


# ---------------------------------------------------------------------------
# Tile selection / VMEM accounting
# ---------------------------------------------------------------------------
_BUDGET_BYTES = 32 << 20   # kernel-buffer budget (fits comfortably on v7x 64 MiB)


def _vmem_bytes(tm, th, d_model, itemsize, single_step):
    x_b = 2 * tm * d_model * itemsize            # double-buffered input tile
    o_b = 2 * tm * d_model * itemsize            # double-buffered output tile
    w1_b = 2 * d_model * th * itemsize           # double-buffered W1 slice
    w2_b = 2 * th * d_model * itemsize           # double-buffered W2 slice
    bias_b = 2 * 8 * (th + d_model) * itemsize   # biases (sublane-padded)
    acc_b = 0 if single_step else tm * d_model * 4
    h_b = tm * th * (4 + itemsize)               # f32 h + cast copy
    return x_b + o_b + w1_b + w2_b + bias_b + acc_b + h_b


def _choose_tiles(M, d_model, d_hidden, itemsize, budget=_BUDGET_BYTES):
    Mr = _round_up(max(M, 1), 8)
    Hfull = _round_up(d_hidden, 128)

    # 1) Prefer a single reduction step: weights DMA'd exactly once from HBM,
    #    no accumulator scratch, no init/finalize work.
    for tm in (1024, 512, 256, 128, 64, 32, 16, 8):
        TM = min(tm, Mr)
        if TM < min(128, Mr):
            break
        if _vmem_bytes(TM, Hfull, d_model, itemsize, True) <= budget:
            return TM, Hfull

    # 2) Otherwise tile d_hidden as a reduction.  Maximize TM first (weights
    #    are re-streamed once per token tile -> TM is the HBM-traffic lever),
    #    then TH (fewer accumulator round-trips / grid steps).
    for tm in (1024, 512, 256, 128, 64, 32, 16, 8):
        TM = min(tm, Mr)
        for th in (2048, 1536, 1024, 512, 256, 128):
            TH = min(th, Hfull)
            if _vmem_bytes(TM, TH, d_model, itemsize, False) <= budget:
                return TM, TH

    # 3) Fallback: tiny tiles (always fits for sane d_model).
    return min(Mr, 8), 128


def _vmem_limit_bytes(est_bytes):
    limit = int(est_bytes * 1.4) + (4 << 20)     # headroom for compiler scratch
    return int(min(max(limit, 32 << 20), 48 << 20))


# ---------------------------------------------------------------------------
# Wrapper
# ---------------------------------------------------------------------------
def feedforward(x, w1, b1, w2, b2, *, tm=None, th=None):
    """x: (B, S, d_model); w1: (d_model, d_hidden); w2: (d_hidden, d_model)."""
    B, S, d_model = x.shape
    d_hidden = w1.shape[1]
    M = B * S
    itemsize = jnp.dtype(x.dtype).itemsize

    auto_tm, auto_th = _choose_tiles(M, d_model, d_hidden, itemsize)
    if tm is not None:
        TM = _round_up(min(tm, _round_up(M, 8)), 8)
    else:
        TM = auto_tm
    if th is not None:
        TH = _round_up(min(th, _round_up(d_hidden, 128)), 128)
    else:
        TH = auto_th

    Mp = _round_up(M, TM)
    Hp = _round_up(d_hidden, TH)
    single_step = (Hp == TH)

    x2d = x.reshape(M, d_model)
    b1_2d = b1.reshape(1, d_hidden)
    b2_2d = b2.reshape(1, d_model)

    # Zero-pad tokens / hidden dim to tile multiples.  Exactness preserved:
    # padded hidden units see zero W1 columns and zero bias -> gelu(0) = 0,
    # and the matching W2 rows are zero, so they contribute nothing.
    if Mp != M:
        x2d = jnp.pad(x2d, ((0, Mp - M), (0, 0)))
    if Hp != d_hidden:
        w1 = jnp.pad(w1, ((0, 0), (0, Hp - d_hidden)))
        b1_2d = jnp.pad(b1_2d, ((0, 0), (0, Hp - d_hidden)))
        w2 = jnp.pad(w2, ((0, Hp - d_hidden), (0, 0)))

    n_token_tiles = Mp // TM
    cost = pl.CostEstimate(
        flops=4 * M * d_model * d_hidden,                 # two matmuls
        transcendentals=M * d_hidden,                     # tanh in GELU
        bytes_accessed=itemsize * (
            2 * M * d_model                               # x in, out
            + (1 if single_step else n_token_tiles) * 2 * d_model * Hp
            + Hp + d_model),
    )
    vmem_limit = _vmem_limit_bytes(
        _vmem_bytes(TM, TH, d_model, itemsize, single_step))

    if single_step:
        grid_spec = pltpu.PrefetchScalarGridSpec(
            num_scalar_prefetch=0,
            grid=(n_token_tiles,),
            in_specs=[
                pl.BlockSpec((TM, d_model), lambda i: (i, 0)),     # x tile
                pl.BlockSpec((d_model, Hp), lambda i: (0, 0)),     # W1 (resident)
                pl.BlockSpec((1, Hp), lambda i: (0, 0)),           # b1 (resident)
                pl.BlockSpec((Hp, d_model), lambda i: (0, 0)),     # W2 (resident)
                pl.BlockSpec((1, d_model), lambda i: (0, 0)),      # b2 (resident)
            ],
            out_specs=pl.BlockSpec((TM, d_model), lambda i: (i, 0)),
        )
        kernel = _ffn_single_kernel
        dims = ("parallel",)
    else:
        grid_spec = pltpu.PrefetchScalarGridSpec(
            num_scalar_prefetch=0,
            grid=(n_token_tiles, Hp // TH),
            in_specs=[
                pl.BlockSpec((TM, d_model), lambda i, k: (i, 0)),   # x tile
                pl.BlockSpec((d_model, TH), lambda i, k: (0, k)),   # W1 slice
                pl.BlockSpec((1, TH), lambda i, k: (0, k)),         # b1 slice
                pl.BlockSpec((TH, d_model), lambda i, k: (k, 0)),   # W2 slice
                pl.BlockSpec((1, d_model), lambda i, k: (0, 0)),    # b2 (resident)
            ],
            out_specs=pl.BlockSpec((TM, d_model), lambda i, k: (i, 0)),
            scratch_shapes=[pltpu.VMEM((TM, d_model), jnp.float32)],
        )
        kernel = _ffn_reduce_kernel
        dims = ("parallel", "arbitrary")

    out2d = pl.pallas_call(
        kernel,
        out_shape=jax.ShapeDtypeStruct((Mp, d_model), x.dtype),
        grid_spec=grid_spec,
        compiler_params=pltpu.CompilerParams(
            dimension_semantics=dims,
            vmem_limit_bytes=vmem_limit,
        ),
        cost_estimate=cost,
    )(x2d, w1, b1_2d, w2, b2_2d)

    return out2d[:M].reshape(B, S, d_model)


def feedforward_ref(x, w1, b1, w2, b2):
    h = _gelu_tanh(x @ w1 + b1)
    return h @ w2 + b2


if __name__ == "__main__":
    key = jax.random.PRNGKey(0)

    # --- Test 1: small GPT-2-like shapes -> auto tiling picks the
    #     single-step (resident-weight) kernel.
    B, S, d_model, d_hidden = 2, 8, 32, 128
    kx, kw1, kb1, kw2, kb2, k2, k3 = jax.random.split(key, 7)
    x = jax.random.normal(kx, (B, S, d_model), dtype=jnp.float32)
    w1 = jax.random.normal(kw1, (d_model, d_hidden), dtype=jnp.float32) * 0.02
    b1 = jax.random.normal(kb1, (d_hidden,), dtype=jnp.float32) * 0.02
    w2 = jax.random.normal(kw2, (d_hidden, d_model), dtype=jnp.float32) * 0.02
    b2 = jax.random.normal(kb2, (d_model,), dtype=jnp.float32) * 0.02

    out = jax.block_until_ready(feedforward(x, w1, b1, w2, b2))
    ref = feedforward_ref(x, w1, b1, w2, b2)
    assert out.shape == (B, S, d_model)
    assert jnp.allclose(out, ref, atol=1e-4, rtol=1e-4), "mismatch (test 1)"

    # --- Test 2: odd sizes + tiny explicit tiles to exercise the reduction
    #     kernel (accumulator, init/finalize) and zero-padding on both axes.
    B2, S2, dm2, dh2 = 2, 10, 32, 200
    ka, kb, kc, kd, ke = jax.random.split(k2, 5)
    x2 = jax.random.normal(ka, (B2, S2, dm2), dtype=jnp.float32)
    w1b = jax.random.normal(kb, (dm2, dh2), dtype=jnp.float32) * 0.02
    b1b = jax.random.normal(kc, (dh2,), dtype=jnp.float32) * 0.02
    w2b = jax.random.normal(kd, (dh2, dm2), dtype=jnp.float32) * 0.02
    b2b = jax.random.normal(ke, (dm2,), dtype=jnp.float32) * 0.02

    out2 = jax.block_until_ready(feedforward(x2, w1b, b1b, w2b, b2b, tm=8, th=128))
    ref2 = feedforward_ref(x2, w1b, b1b, w2b, b2b)
    assert out2.shape == (B2, S2, dm2)
    assert jnp.allclose(out2, ref2, atol=1e-4, rtol=1e-4), "mismatch (test 2)"

    # --- Test 3: auto tiling with a multi-token-tile grid (single-step path,
    #     several token tiles, lane-dense 128-multiple d_model).
    B3, S3, dm3, dh3 = 2, 64, 256, 1024
    kf, kg, kh, ki, kj = jax.random.split(k3, 5)
    x3 = jax.random.normal(kf, (B3, S3, dm3), dtype=jnp.float32)
    w1c = jax.random.normal(kg, (dm3, dh3), dtype=jnp.float32) * 0.02
    b1c = jax.random.normal(kh, (dh3,), dtype=jnp.float32) * 0.02
    w2c = jax.random.normal(ki, (dh3, dm3), dtype=jnp.float32) * 0.02
    b2c = jax.random.normal(kj, (dm3,), dtype=jnp.float32) * 0.02

    out3 = jax.block_until_ready(feedforward(x3, w1c, b1c, w2c, b2c))
    ref3 = feedforward_ref(x3, w1c, b1c, w2c, b2c)
    assert out3.shape == (B3, S3, dm3)
    assert jnp.allclose(out3, ref3, atol=1e-4, rtol=1e-4), "mismatch (test 3)"

    print("KERNEL_OK")
</pallas_src>

<mosaic_0001>
module attributes {stable_mosaic.version = 11 : i64} {
  func.func @_ffn_single_kernel(%arg0: i32, %arg1: memref<16x32xf32, #tpu.memory_space<vmem>>, %arg2: memref<32x128xf32, #tpu.memory_space<vmem>>, %arg3: memref<1x128xf32, #tpu.memory_space<vmem>>, %arg4: memref<128x32xf32, #tpu.memory_space<vmem>>, %arg5: memref<1x32xf32, #tpu.memory_space<vmem>>, %arg6: memref<16x32xf32, #tpu.memory_space<vmem>>) attributes {dimension_semantics = [#tpu.dimension_semantics<parallel>], iteration_bounds = array<i64: 1>, scalar_prefetch = 0 : i64, scratch_operands = 0 : i64, tpu.core_type = #tpu.core_type<tc>, window_params = [{transform_indices = @transform_0, window_bounds = array<i64: 16, 32>}, {pipeline_mode = #tpu.pipeline_mode<synchronous>, transform_indices = @transform_1, window_bounds = array<i64: 32, 128>}, {pipeline_mode = #tpu.pipeline_mode<synchronous>, transform_indices = @transform_2, window_bounds = array<i64: 1, 128>}, {pipeline_mode = #tpu.pipeline_mode<synchronous>, transform_indices = @transform_3, window_bounds = array<i64: 128, 32>}, {pipeline_mode = #tpu.pipeline_mode<synchronous>, transform_indices = @transform_4, window_bounds = array<i64: 1, 32>}, {transform_indices = @transform_5, window_bounds = array<i64: 16, 32>}]} {
    %c0 = arith.constant 0 : index
    %c0_0 = arith.constant 0 : index
    %0 = vector.load %arg1[%c0, %c0_0] : memref<16x32xf32, #tpu.memory_space<vmem>>, vector<16x32xf32>
    %c0_1 = arith.constant 0 : index
    %c0_2 = arith.constant 0 : index
    %1 = vector.load %arg2[%c0_1, %c0_2] : memref<32x128xf32, #tpu.memory_space<vmem>>, vector<32x128xf32>
    %cst = arith.constant dense<0.000000e+00> : vector<16x128xf32>
    %2 = tpu.matmul %0, %1, %cst {dimension_numbers = #tpu.dot_dimension_numbers<[1], [0], [0], [1], [0, 0, 1, 1], [], []>} : vector<16x32xf32>, vector<32x128xf32>, vector<16x128xf32> -> vector<16x128xf32>
    %c0_3 = arith.constant 0 : index
    %c0_4 = arith.constant 0 : index
    %3 = vector.load %arg3[%c0_3, %c0_4] : memref<1x128xf32, #tpu.memory_space<vmem>>, vector<1x128xf32>
    %4 = vector.broadcast %3 : vector<1x128xf32> to vector<16x128xf32>
    %5 = arith.addf %2, %4 : vector<16x128xf32>
    %cst_5 = arith.constant 5.000000e-01 : f32
    %6 = vector.broadcast %cst_5 : f32 to vector<16x128xf32>
    %7 = arith.mulf %6, %5 : vector<16x128xf32>
    %cst_6 = arith.constant 4.471500e-02 : f32
    %8 = vector.broadcast %cst_6 : f32 to vector<16x128xf32>
    %9 = arith.mulf %8, %5 : vector<16x128xf32>
    %10 = arith.mulf %9, %5 : vector<16x128xf32>
    %11 = arith.mulf %10, %5 : vector<16x128xf32>
    %12 = arith.addf %5, %11 : vector<16x128xf32>
    %cst_7 = arith.constant 0.797884583 : f32
    %13 = vector.broadcast %cst_7 : f32 to vector<16x128xf32>
    %14 = arith.mulf %13, %12 : vector<16x128xf32>
    %15 = math.tanh %14 : vector<16x128xf32>
    %cst_8 = arith.constant 1.000000e+00 : f32
    %16 = vector.broadcast %cst_8 : f32 to vector<16x128xf32>
    %17 = arith.addf %16, %15 : vector<16x128xf32>
    %18 = arith.mulf %7, %17 : vector<16x128xf32>
    %c0_9 = arith.constant 0 : index
    %c0_10 = arith.constant 0 : index
    %19 = vector.load %arg4[%c0_9, %c0_10] : memref<128x32xf32, #tpu.memory_space<vmem>>, vector<128x32xf32>
    %cst_11 = arith.constant dense<0.000000e+00> : vector<16x32xf32>
    %20 = tpu.matmul %18, %19, %cst_11 {dimension_numbers = #tpu.dot_dimension_numbers<[1], [0], [0], [1], [0, 0, 1, 1], [], []>} : vector<16x128xf32>, vector<128x32xf32>, vector<16x32xf32> -> vector<16x32xf32>
    %c0_12 = arith.constant 0 : index
    %c0_13 = arith.constant 0 : index
    %21 = vector.load %arg5[%c0_12, %c0_13] : memref<1x32xf32, #tpu.memory_space<vmem>>, vector<1x32xf32>
    %22 = vector.broadcast %21 : vector<1x32xf32> to vector<16x32xf32>
    %23 = arith.addf %20, %22 : vector<16x32xf32>
    %c0_14 = arith.constant 0 : index
    %c0_15 = arith.constant 0 : index
    %24 = vector.load %arg6[%c0_14, %c0_15] : memref<16x32xf32, #tpu.memory_space<vmem>>, vector<16x32xf32>
    tpu.vector_store %arg6[%c0_14, %c0_15], %23 {strides = array<i32>} : memref<16x32xf32, #tpu.memory_space<vmem>>, vector<16x32xf32>,
    return
  }
  func.func @transform_0(%arg0: i32) -> (i32, i32) {
    %c0_i32 = arith.constant 0 : i32
    %c0_i32_0 = arith.constant 0 : i32
    return %arg0, %c0_i32 : i32, i32
  }
  func.func @transform_1(%arg0: i32) -> (i32, i32) {
    %c0_i32 = arith.constant 0 : i32
    %c0_i32_0 = arith.constant 0 : i32
    %c0_i32_1 = arith.constant 0 : i32
    return %c0_i32, %c0_i32_0 : i32, i32
  }
  func.func @transform_2(%arg0: i32) -> (i32, i32) {
    %c0_i32 = arith.constant 0 : i32
    %c0_i32_0 = arith.constant 0 : i32
    %c0_i32_1 = arith.constant 0 : i32
    return %c0_i32, %c0_i32_0 : i32, i32
  }
  func.func @transform_3(%arg0: i32) -> (i32, i32) {
    %c0_i32 = arith.constant 0 : i32
    %c0_i32_0 = arith.constant 0 : i32
    %c0_i32_1 = arith.constant 0 : i32
    return %c0_i32, %c0_i32_0 : i32, i32
  }
  func.func @transform_4(%arg0: i32) -> (i32, i32) {
    %c0_i32 = arith.constant 0 : i32
    %c0_i32_0 = arith.constant 0 : i32
    %c0_i32_1 = arith.constant 0 : i32
    return %c0_i32, %c0_i32_0 : i32, i32
  }
  func.func @transform_5(%arg0: i32) -> (i32, i32) {
    %c0_i32 = arith.constant 0 : i32
    %c0_i32_0 = arith.constant 0 : i32
    return %arg0, %c0_i32 : i32, i32
  }
}

</mosaic_0001>

<llo_original>
// kernel: tpu_custom_call.1
$region0: #{tpu_custom_call.1}
  #allocation0 [shape = 'u32[]', space=smem, size = 0x4, offset = 0x4, fixed_abs, tag = 'smem constant byte address 0x4 - core index']
  #allocation1 [shape = 'u32[72,128]{1,0:T(1,128)}', space=vmem, size = 0x9000, scoped, tag = 'internal scratch']
  %s0 = inlined_call_operand.vmem [shape: f32[16,32], index: 0, kind: input, shape index: {}]
  %s1 = inlined_call_operand.vmem [shape: f32[32,128], index: 1, kind: input, shape index: {}]
  %s2 = inlined_call_operand.vmem [shape: f32[1,128], index: 2, kind: input, shape index: {}]
  %s3 = inlined_call_operand.vmem [shape: f32[128,32], index: 3, kind: input, shape index: {}]
  %s4 = inlined_call_operand.vmem [shape: f32[1,32], index: 4, kind: input, shape index: {}]
  %s5 = inlined_call_operand.hbm [shape: f32[16,32], index: 5, kind: output, shape index: {}]
  %s6 = sld [smem:[#allocation0]]
  $region30: #{tpu_custom_call.1} parent=0
    _
  %s8 = ssub.s32 1, %s6
  %s9 = scalar_select 0, %s8, %s6
  $region1: #{tpu_custom_call.1} parent=0
    #allocation2 [shape = 'u8[8192]{0}', space=vmem, size = 0x2000, scoped, tag = 'output window, operand 0, single buffered']
    #allocation3 [shape = 's32[1]{0}', space=sflag, size = 0x4, scoped, tag = 'scoped memory for tpu_custom_call.1']
    %10 = vsyncpa [#allocation3], 0
    // Predicated region
    $region2: #{tpu_custom_call.1} parent=1 // pred_check
      _
    $region3: #{tpu_custom_call.1} parent=1 // pred_check_branch
      %12 = sbr.rel (0) target = $region5
    $region4: #{tpu_custom_call.1} parent=1 // pred_region
      _
    $region5: #{tpu_custom_call.1} parent=1 // pred_fallthru
      _
    // Predicated region
    $region6: #{tpu_custom_call.1} parent=1 // pred_check
      _
    $region7: #{tpu_custom_call.1} parent=1 // pred_check_branch
      %14 = sbr.rel (0) target = $region9
    $region8: #{tpu_custom_call.1} parent=1 // pred_region
      _
    $region9: #{tpu_custom_call.1} parent=1 // pred_fallthru
      _
    // Predicated region
    $region10: #{tpu_custom_call.1} parent=1 // pred_check
      _
    $region11: #{tpu_custom_call.1} parent=1 // pred_check_branch
      %16 = sbr.rel (0) target = $region13
    $region12: #{tpu_custom_call.1} parent=1 // pred_region
      _
    $region13: #{tpu_custom_call.1} parent=1 // pred_fallthru
      _
    // Predicated region
    $region14: #{tpu_custom_call.1} parent=1 // pred_check
      _
    $region15: #{tpu_custom_call.1} parent=1 // pred_check_branch
      %18 = sbr.rel (0) target = $region17
    $region16: #{tpu_custom_call.1} parent=1 // pred_region
      _
    $region17: #{tpu_custom_call.1} parent=1 // pred_fallthru
      _
    // Predicated region
    $region18: #{tpu_custom_call.1} parent=1 // pred_check
      _
    $region19: #{tpu_custom_call.1} parent=1 // pred_check_branch
      %20 = sbr.rel (0) target = $region21
    $region20: #{tpu_custom_call.1} parent=1 // pred_region
      _
    $region21: #{tpu_custom_call.1} parent=1 // pred_fallthru
      _
    %v21 = vld [vmem:[%s0] sm:$0xff]
    %v22 = vld [vmem:[%s0 + $0x8] sm:$0xff]
    %v23 = vld [vmem:[%s1] sm:$0xff]
    %v24 = vld [vmem:[%s1 + $0x8] sm:$0xff]
    %v25 = vld [vmem:[%s1 + $0x10] sm:$0xff]
    %v26 = vld [vmem:[%s1 + $0x18] sm:$0xff]
    %v27 = vld [vmem:[%s2] sm:$0x1]
    %v29 = vperm.slane %v27, 0
    %vm31 = vcmask 261120
    %v33 = vsel %vm31, %v21, 0
    %v36 = vsel %vm31, %v22, 0
    %38 = vmatpush.msra.mxu0 0.0
    %39 = vmatpush.msra.mxu0 0.0
    %40 = vmatpush.msra.mxu0 0.0
    %41 = vmatpush.msra.mxu0 0.0
    %42 = vmatpush.msra.mxu0 0.0
    %43 = vmatpush.msra.mxu0 0.0
    %44 = vmatpush.msra.mxu0 0.0
    %45 = vmatpush.msra.mxu0 0.0
    %46 = vmatpush.msra.mxu0 0.0
    %47 = vmatpush.msra.mxu0 0.0
    %48 = vmatpush.msra.mxu0 0.0
    %49 = vmatpush.msra.mxu0 0.0
    %50 = vmatpush.msra.mxu0 %v26
    %51 = vmatpush.msra.mxu0 %v25
    %52 = vmatpush.msra.mxu0 %v24
    %53 = vmatpush.msra.mxu0 %v23
    %54 = vmatmul.f32.gmra.mxu0 %v33
    %v55 = vpop.f32.mrf.mxu0
    %v56 = vadd.f32 %v29, %v55
    %57 = vmatmul.f32.gmra.mxu0 %v36
    %v58 = vpop.f32.mrf.mxu0
    %v59 = vadd.f32 %v29, %v58
    %60 = vdwg.mxu0
    %v61 = vmul.f32 %v56, 0.5
    %v62 = vmul.f32 %v59, 0.5
    %v63 = vmul.f32 %v56, 0.044715
    %v64 = vmul.f32 %v59, 0.044715
    %v65 = vmul.f32 %v63, %v56
    %v66 = vmul.f32 %v64, %v59
    %v67 = vmul.f32 %v65, %v56
    %v68 = vmul.f32 %v66, %v59
    %v69 = vadd.f32 %v56, %v67
    %v70 = vadd.f32 %v59, %v68
    %v71 = vmul.f32 %v69, 0.7978846
    %v72 = vmul.f32 %v70, 0.7978846
    %v73 = vtanh.pop %v71
    %v74 = vtanh.pop %v72
    %v75 = vadd.f32 %v73, 1.0
    %v76 = vadd.f32 %v74, 1.0
    %v77 = vmul.f32 %v61, %v75
    %v78 = vmul.f32 %v62, %v76
    %v79 = vld [vmem:[%s3] sm:$0xff]
    %v80 = vld [vmem:[%s3 + $0x8] sm:$0xff]
    %v81 = vld [vmem:[%s3 + $0x10] sm:$0xff]
    %v82 = vld [vmem:[%s3 + $0x18] sm:$0xff]
    %v83 = vld [vmem:[%s3 + $0x20] sm:$0xff]
    %v84 = vld [vmem:[%s3 + $0x28] sm:$0xff]
    %v85 = vld [vmem:[%s3 + $0x30] sm:$0xff]
    %v86 = vld [vmem:[%s3 + $0x38] sm:$0xff]
    %v87 = vld [vmem:[%s3 + $0x40] sm:$0xff]
    %v88 = vld [vmem:[%s3 + $0x48] sm:$0xff]
    %v89 = vld [vmem:[%s3 + $0x50] sm:$0xff]
    %v90 = vld [vmem:[%s3 + $0x58] sm:$0xff]
    %v91 = vld [vmem:[%s3 + $0x60] sm:$0xff]
    %v92 = vld [vmem:[%s3 + $0x68] sm:$0xff]
    %v93 = vld [vmem:[%s3 + $0x70] sm:$0xff]
    %v94 = vld [vmem:[%s3 + $0x78] sm:$0xff]
    %v95 = vld [vmem:[%s4] sm:$0x1]
    %v97 = vperm.slane %v95, 0
    %99 = vmatpush.msra.mxu0 %v94
    %100 = vmatpush.msra.mxu0 %v93
    %101 = vmatpush.msra.mxu0 %v92
    %102 = vmatpush.msra.mxu0 %v91
    %103 = vmatpush.msra.mxu0 %v90
    %104 = vmatpush.msra.mxu0 %v89
    %105 = vmatpush.msra.mxu0 %v88
    %106 = vmatpush.msra.mxu0 %v87
    %107 = vmatpush.msra.mxu0 %v86
    %108 = vmatpush.msra.mxu0 %v85
    %109 = vmatpush.msra.mxu0 %v84
    %110 = vmatpush.msra.mxu0 %v83
    %111 = vmatpush.msra.mxu0 %v82
    %112 = vmatpush.msra.mxu0 %v81
    %113 = vmatpush.msra.mxu0 %v80
    %114 = vmatpush.msra.mxu0 %v79
    %115 = vmatmul.f32.gmra.mxu0 %v77
    %v116 = vpop.f32.mrf.mxu0
    %v117 = vadd.f32 %v97, %v116
    %118 = vmatmul.f32.gmra.mxu0 %v78
    %v119 = vpop.f32.mrf.mxu0
    %v120 = vadd.f32 %v97, %v119
    %121 = vdwg.mxu0
    %122 = vst.msk [vmem:[#allocation2] sm:$0xff] %vm31, %v117
    %123 = vst.msk [vmem:[#allocation2 + $0x8] sm:$0xff] %vm31, %v120
    // Predicated region
    $region22: #{tpu_custom_call.1} parent=1 // pred_check
      _
    $region23: #{tpu_custom_call.1} parent=1 // pred_check_branch
      %125 = sbr.rel (0) target = $region25
    $region24: #{tpu_custom_call.1} parent=1 // pred_region
      %127 = vsyncadd [#allocation3], 0
      %s128 = sshll.u32 [#allocation2], 4
      %s129 = int_to_ptr.vmem [resolvable:$true] %s128
      %s130 = sshll.u32 %s5, 4
      %s131 = int_to_ptr.hbm [resolvable:$true] %s130
      %136 = dma.vmem_to_hbm [thread:$0]  %s129, 256, %s131, [#allocation3], 128, 128, 8
    $region25: #{tpu_custom_call.1} parent=1 // pred_fallthru
      _
    // Predicated region
    $region26: #{tpu_custom_call.1} parent=1 // pred_check
      _
    $region27: #{tpu_custom_call.1} parent=1 // pred_check_branch
      %138 = sbr.rel (0) target = $region29
    $region28: #{tpu_custom_call.1} parent=1 // pred_region
      %140 = dma.done [#allocation3], 256
    $region29: #{tpu_custom_call.1} parent=1 // pred_fallthru
      _
    %141 = vsyncpa [#allocation3], 1

</llo_original>
